<compile_context>
chip_gen: v5e
topology: v5e:2x2
jax: 0.10.0
libtpu: 0.0.40
codegen_flags: <defaults>
</compile_context>

<pallas_src>
import functools

import jax
import jax.numpy as jnp
from jax import lax
from jax.experimental import pallas as pl
from jax.experimental.pallas import tpu as pltpu

# Fixed MaxPool3d config from the PyTorch module: kernel=3, stride=1, padding=1,
# ceil_mode=False  ->  output spatial dims == input spatial dims.
KD, KH, KW = 3, 3, 3
SD, SH, SW = 1, 1, 1
PD, PH, PW = 1, 1, 1


def _neg_value(dtype):
    """Identity element for max in this dtype (so 'padding' never wins)."""
    if jnp.issubdtype(dtype, jnp.floating):
        return float("-inf")
    return int(jnp.iinfo(dtype).min)


def _pick_block_channels(nc, bytes_per_channel, target_bytes=2 << 20, min_steps=4):
    """Channels per grid step: as large as possible under ~target_bytes per input
    block, while keeping >= min_steps grid steps (when there are enough channels)
    so the "parallel" axis can split across TensorCores on v7x."""
    bc = max(1, min(nc, target_bytes // max(1, bytes_per_channel)))
    if nc >= min_steps:
        bc = min(bc, max(1, nc // min_steps))
    return int(bc)


def _maxpool3d_kernel(x_ref, o_ref, *, D, H, W, neg_val):
    """x_ref / o_ref: (Bc, D, H*W) tiles; the last (lane) axis is the flattened HxW plane.

    Separable 3-tap max along W (lane rolls by +-1), H (lane rolls by +-W) and D
    (sublane rolls by +-1).  Out-of-range taps are masked to the dtype minimum using
    small broadcastable masks, reproducing MaxPool3d padding=1 semantics exactly.
    """
    Bc, Db, HW = x_ref.shape
    dt = x_ref.dtype
    neg = jnp.asarray(neg_val, dtype=dt)

    # --- boundary masks, hoisted once at small broadcastable shapes ---
    lane = lax.broadcasted_iota(jnp.int32, (1, 1, HW), 2)
    if W & (W - 1) == 0:                      # power-of-two fast path
        w_idx = jnp.bitwise_and(lane, W - 1)
    else:
        w_idx = lane % W
    w_first = w_idx == 0                      # (1, 1, HW)
    w_last = w_idx == (W - 1)
    h_first = lane < W
    h_last = lane >= (H - 1) * W
    d_idx = lax.broadcasted_iota(jnp.int32, (1, D, 1), 1)
    d_first = d_idx == 0                      # (1, D, 1)
    d_last = d_idx == (D - 1)

    m = x_ref[...]                            # accumulator = center tap

    # --- W direction: neighbors at lane +- 1 ---
    if W > 1:
        left = jnp.where(w_first, neg, pltpu.roll(m, shift=1, axis=2))
        right = jnp.where(w_last, neg, pltpu.roll(m, shift=HW - 1, axis=2))
        m = jnp.maximum(m, jnp.maximum(left, right))

    # --- H direction: neighbors at lane +- W ---
    if H > 1:
        up = jnp.where(h_first, neg, pltpu.roll(m, shift=W, axis=2))
        down = jnp.where(h_last, neg, pltpu.roll(m, shift=HW - W, axis=2))
        m = jnp.maximum(m, jnp.maximum(up, down))

    # --- D direction: neighbors at d +- 1 via sublane rolls ---
    if D > 1:
        prev = jnp.where(d_first, neg, pltpu.roll(m, shift=1, axis=1))
        nxt = jnp.where(d_last, neg, pltpu.roll(m, shift=D - 1, axis=1))
        m = jnp.maximum(m, jnp.maximum(prev, nxt))

    o_ref[...] = m


def maxpool3d(x):
    """MaxPool3d(kernel=3, stride=1, padding=1, ceil_mode=False) on NCDHW input."""
    N, C, D, H, W = x.shape
    Do = (D + 2 * PD - KD) // SD + 1
    Ho = (H + 2 * PH - KH) // SH + 1
    Wo = (W + 2 * PW - KW) // SW + 1
    if (Do, Ho, Wo) != (D, H, W):
        raise ValueError("kernel is specialized to k=3, s=1, p=1 (output == input shape)")

    NC, HW = N * C, H * W
    # Free (no-copy) reshape: channels on the grid axis, flattened H*W on the lane axis.
    xr = x.reshape(NC, D, HW)

    itemsize = jnp.dtype(x.dtype).itemsize
    bytes_per_channel = D * HW * itemsize
    bc = _pick_block_channels(NC, bytes_per_channel)
    grid = (pl.cdiv(NC, bc),)          # non-divisor blocking: last block may be partial

    block_bytes = bc * bytes_per_channel
    # ~2x in + 2x out double-buffering + live elementwise temps, with headroom; keep
    # well under v7x's 64 MiB physical VMEM per TensorCore.
    vmem_limit = int(min(48 << 20, max(16 << 20, 8 * block_bytes)))
    # TODO(synk): for very large D*H*W volumes a single channel (x ~8x working set)
    # may exceed scoped VMEM; add a spatial (D-halo) tiling path in that regime.
    # TODO(synk): bf16/int8 inputs under-fill (16,128)/(32,128) tiles when D < 16/32;
    # fold channels onto the sublane axis with a seam mask in the D pass.

    kernel = functools.partial(
        _maxpool3d_kernel, D=D, H=H, W=W, neg_val=_neg_value(x.dtype)
    )

    out = pl.pallas_call(
        kernel,
        out_shape=jax.ShapeDtypeStruct((NC, D, HW), x.dtype),
        grid_spec=pltpu.PrefetchScalarGridSpec(
            num_scalar_prefetch=0,
            grid=grid,
            in_specs=[pl.BlockSpec((bc, D, HW), lambda i: (i, 0, 0))],
            out_specs=pl.BlockSpec((bc, D, HW), lambda i: (i, 0, 0)),
        ),
        compiler_params=pltpu.CompilerParams(
            dimension_semantics=("parallel",),
            vmem_limit_bytes=vmem_limit,
        ),
        cost_estimate=pl.CostEstimate(
            flops=12 * x.size,
            transcendentals=0,
            bytes_accessed=2 * x.size * itemsize,
        ),
    )(xr)

    return out.reshape(N, C, Do, Ho, Wo)


def _maxpool3d_ref(x):
    """Pure-JAX reference via lax.reduce_window (correctness check only)."""
    return lax.reduce_window(
        x,
        -jnp.inf,
        lax.max,
        window_dimensions=(1, 1, KD, KH, KW),
        window_strides=(1, 1, SD, SH, SW),
        padding=((0, 0), (0, 0), (PD, PD), (PH, PH), (PW, PW)),
    )


if __name__ == "__main__":
    key = jax.random.PRNGKey(0)
    # Small NCDHW input consistent with the module's forward.
    x = jax.random.normal(key, (2, 4, 8, 16, 16), dtype=jnp.float32)

    pool = jax.jit(maxpool3d)
    y = jax.block_until_ready(pool(x))

    y_ref = _maxpool3d_ref(x)
    assert y.shape == y_ref.shape, (y.shape, y_ref.shape)
    assert jnp.allclose(y, y_ref), "Pallas MaxPool3D mismatch vs reference"

    print("KERNEL_OK")
</pallas_src>

<mosaic_0001>
module attributes {stable_mosaic.version = 11 : i64} {
  func.func @_maxpool3d_kernel(%arg0: i32, %arg1: memref<2x8x256xf32, #tpu.memory_space<vmem>>, %arg2: memref<2x8x256xf32, #tpu.memory_space<vmem>>) attributes {dimension_semantics = [#tpu.dimension_semantics<parallel>], iteration_bounds = array<i64: 4>, scalar_prefetch = 0 : i64, scratch_operands = 0 : i64, tpu.core_type = #tpu.core_type<tc>, window_params = [{transform_indices = @transform_0, window_bounds = array<i64: 2, 8, 256>}, {transform_indices = @transform_1, window_bounds = array<i64: 2, 8, 256>}]} {
    %0 = tpu.iota {dimensions = array<i32: 2>} : vector<1x1x256xi32>
    %c15_i32 = arith.constant 15 : i32
    %1 = vector.broadcast %c15_i32 : i32 to vector<1x1x256xi32>
    %2 = arith.andi %0, %1 : vector<1x1x256xi32>
    %c0_i32 = arith.constant 0 : i32
    %3 = vector.broadcast %c0_i32 : i32 to vector<1x1x256xi32>
    %4 = arith.cmpi eq, %2, %3 : vector<1x1x256xi32>
    %c15_i32_0 = arith.constant 15 : i32
    %5 = vector.broadcast %c15_i32_0 : i32 to vector<1x1x256xi32>
    %6 = arith.cmpi eq, %2, %5 : vector<1x1x256xi32>
    %c16_i32 = arith.constant 16 : i32
    %7 = vector.broadcast %c16_i32 : i32 to vector<1x1x256xi32>
    %8 = arith.cmpi slt, %0, %7 : vector<1x1x256xi32>
    %c240_i32 = arith.constant 240 : i32
    %9 = vector.broadcast %c240_i32 : i32 to vector<1x1x256xi32>
    %10 = arith.cmpi sge, %0, %9 : vector<1x1x256xi32>
    %11 = tpu.iota {dimensions = array<i32: 1>} : vector<1x8x1xi32>
    %c0_i32_1 = arith.constant 0 : i32
    %12 = vector.broadcast %c0_i32_1 : i32 to vector<1x8x1xi32>
    %13 = arith.cmpi eq, %11, %12 : vector<1x8x1xi32>
    %c7_i32 = arith.constant 7 : i32
    %14 = vector.broadcast %c7_i32 : i32 to vector<1x8x1xi32>
    %15 = arith.cmpi eq, %11, %14 : vector<1x8x1xi32>
    %c0 = arith.constant 0 : index
    %c0_2 = arith.constant 0 : index
    %c0_3 = arith.constant 0 : index
    %16 = vector.load %arg1[%c0, %c0_2, %c0_3] : memref<2x8x256xf32, #tpu.memory_space<vmem>>, vector<2x8x256xf32>
    %c1_i32 = arith.constant 1 : i32
    %17 = tpu.dynamic_rotate %16 by %c1_i32 dim 2 : vector<2x8x256xf32>, i32 -> vector<2x8x256xf32>
    %cst = arith.constant 0xFF800000 : f32
    %18 = vector.shape_cast %4 : vector<1x1x256xi1> to vector<1x1x256xi1>
    %19 = vector.broadcast %18 : vector<1x1x256xi1> to vector<2x8x256xi1>
    %20 = vector.broadcast %cst : f32 to vector<2x8x256xf32>
    %21 = arith.select %19, %20, %17 : vector<2x8x256xi1>, vector<2x8x256xf32>
    %c255_i32 = arith.constant 255 : i32
    %22 = tpu.dynamic_rotate %16 by %c255_i32 dim 2 : vector<2x8x256xf32>, i32 -> vector<2x8x256xf32>
    %cst_4 = arith.constant 0xFF800000 : f32
    %23 = vector.shape_cast %6 : vector<1x1x256xi1> to vector<1x1x256xi1>
    %24 = vector.broadcast %23 : vector<1x1x256xi1> to vector<2x8x256xi1>
    %25 = vector.broadcast %cst_4 : f32 to vector<2x8x256xf32>
    %26 = arith.select %24, %25, %22 : vector<2x8x256xi1>, vector<2x8x256xf32>
    %27 = arith.maximumf %21, %26 : vector<2x8x256xf32>
    %28 = arith.maximumf %16, %27 : vector<2x8x256xf32>
    %c16_i32_5 = arith.constant 16 : i32
    %29 = tpu.dynamic_rotate %28 by %c16_i32_5 dim 2 : vector<2x8x256xf32>, i32 -> vector<2x8x256xf32>
    %cst_6 = arith.constant 0xFF800000 : f32
    %30 = vector.shape_cast %8 : vector<1x1x256xi1> to vector<1x1x256xi1>
    %31 = vector.broadcast %30 : vector<1x1x256xi1> to vector<2x8x256xi1>
    %32 = vector.broadcast %cst_6 : f32 to vector<2x8x256xf32>
    %33 = arith.select %31, %32, %29 : vector<2x8x256xi1>, vector<2x8x256xf32>
    %c240_i32_7 = arith.constant 240 : i32
    %34 = tpu.dynamic_rotate %28 by %c240_i32_7 dim 2 : vector<2x8x256xf32>, i32 -> vector<2x8x256xf32>
    %cst_8 = arith.constant 0xFF800000 : f32
    %35 = vector.shape_cast %10 : vector<1x1x256xi1> to vector<1x1x256xi1>
    %36 = vector.broadcast %35 : vector<1x1x256xi1> to vector<2x8x256xi1>
    %37 = vector.broadcast %cst_8 : f32 to vector<2x8x256xf32>
    %38 = arith.select %36, %37, %34 : vector<2x8x256xi1>, vector<2x8x256xf32>
    %39 = arith.maximumf %33, %38 : vector<2x8x256xf32>
    %40 = arith.maximumf %28, %39 : vector<2x8x256xf32>
    %c1_i32_9 = arith.constant 1 : i32
    %41 = tpu.dynamic_rotate %40 by %c1_i32_9 dim 1 : vector<2x8x256xf32>, i32 -> vector<2x8x256xf32>
    %cst_10 = arith.constant 0xFF800000 : f32
    %42 = vector.shape_cast %13 : vector<1x8x1xi1> to vector<1x8x1xi1>
    %43 = vector.broadcast %42 : vector<1x8x1xi1> to vector<2x8x256xi1>
    %44 = vector.broadcast %cst_10 : f32 to vector<2x8x256xf32>
    %45 = arith.select %43, %44, %41 : vector<2x8x256xi1>, vector<2x8x256xf32>
    %c7_i32_11 = arith.constant 7 : i32
    %46 = tpu.dynamic_rotate %40 by %c7_i32_11 dim 1 : vector<2x8x256xf32>, i32 -> vector<2x8x256xf32>
    %cst_12 = arith.constant 0xFF800000 : f32
    %47 = vector.shape_cast %15 : vector<1x8x1xi1> to vector<1x8x1xi1>
    %48 = vector.broadcast %47 : vector<1x8x1xi1> to vector<2x8x256xi1>
    %49 = vector.broadcast %cst_12 : f32 to vector<2x8x256xf32>
    %50 = arith.select %48, %49, %46 : vector<2x8x256xi1>, vector<2x8x256xf32>
    %51 = arith.maximumf %45, %50 : vector<2x8x256xf32>
    %52 = arith.maximumf %40, %51 : vector<2x8x256xf32>
    %c0_13 = arith.constant 0 : index
    %c0_14 = arith.constant 0 : index
    %c0_15 = arith.constant 0 : index
    %53 = vector.load %arg2[%c0_13, %c0_14, %c0_15] : memref<2x8x256xf32, #tpu.memory_space<vmem>>, vector<2x8x256xf32>
    tpu.vector_store %arg2[%c0_13, %c0_14, %c0_15], %52 {strides = array<i32>} : memref<2x8x256xf32, #tpu.memory_space<vmem>>, vector<2x8x256xf32>,
    return
  }
  func.func @transform_0(%arg0: i32) -> (i32, i32, i32) {
    %c0_i32 = arith.constant 0 : i32
    %c0_i32_0 = arith.constant 0 : i32
    %c0_i32_1 = arith.constant 0 : i32
    return %arg0, %c0_i32, %c0_i32_0 : i32, i32, i32
  }
  func.func @transform_1(%arg0: i32) -> (i32, i32, i32) {
    %c0_i32 = arith.constant 0 : i32
    %c0_i32_0 = arith.constant 0 : i32
    %c0_i32_1 = arith.constant 0 : i32
    return %arg0, %c0_i32, %c0_i32_0 : i32, i32, i32
  }
}

</mosaic_0001>

<llo_original>
// kernel: maxpool3d.1
$region0: #{maxpool3d.1}
  #allocation0 [shape = 'u32[]', space=smem, size = 0x4, offset = 0x4, fixed_abs, tag = 'smem constant byte address 0x4 - core index']
  #allocation1 [shape = 'u32[72,128]{1,0:T(1,128)}', space=vmem, size = 0x9000, scoped, tag = 'internal scratch']
  %s0 = inlined_call_operand.vmem [shape: f32[8,8,256], index: 0, kind: input, shape index: {}]
  %s1 = inlined_call_operand.vmem [shape: f32[8,8,256], index: 1, kind: output, shape index: {}]
  %s2 = sld [smem:[#allocation0]]
  $region37: #{maxpool3d.1} parent=0
    _
  %s4 = ssub.s32 1, %s2
  %s5 = scalar_select 0, %s4, %s2
  loop: start=0, step=1, limit=6
  $region2: #{maxpool3d.1} parent=0 // loop_pre_header
    _
  $region3: #{maxpool3d.1} parent=0 // loop_header
    %s7 = sphi 0, %s11
    %p8 = scmp.ge.s32.totalorder %s7, 6
    %s17 = sphi 0, %s19
    %s20 = sphi 0, %s17
    %s21 = sphi 0, %s20
    %s37 = sphi 0, %s21
    %s43 = sphi 0, %s45
    %s46 = sphi 0, %s43
    %s47 = sphi 0, %s46
    %s63 = sphi 0, %s47
  $region4: #{maxpool3d.1} parent=0 // loop_header_branch
    %10 = sbr.rel (%p8) target = $region8
  $region5: #{maxpool3d.1} parent=0 // loop_body
    %s12 = ssub.s32 %s7, 1
    %s13 = ssub.s32 %s7, 2
    %s14 = sadd.s32 %s7, 1
    %s15 = ssub.s32 %s7, %s14
    %p16 = scmp.eq.s32.totalorder %s15, 0
    %s18 = sadd.s32 %s17, 1
    %s19 = scalar_select %p16, %s17, %s18
    %p22 = pneg %p16
    %p23 = scmp.eq.s32.totalorder %s7, 3
    %p24 = por %p22, %p23
    %p25 = scmp.ne.s32.totalorder %s17, %s20
    %p26 = scmp.eq.s32.totalorder %s7, 0
    %p27 = por %p25, %p26
    %p28 = scmp.ne.s32.totalorder %s17, %s20
    %p29 = scmp.eq.s32.totalorder %s12, 3
    %p30 = por %p28, %p29
    %p31 = scmp.ne.s32.totalorder %s20, %s21
    %p32 = scmp.eq.s32.totalorder %s12, 0
    %p33 = por %p31, %p32
    %p34 = scmp.ne.s32.totalorder %s20, %s21
    %p35 = scmp.eq.s32.totalorder %s13, 3
    %p36 = por %p34, %p35
    %p38 = scmp.ne.s32.totalorder %s21, %s37
    %p39 = scmp.eq.s32.totalorder %s13, 0
    %p40 = por %p38, %p39
    %s41 = ssub.s32 %s7, %s14
    %p42 = scmp.eq.s32.totalorder %s41, 0
    %s44 = sadd.s32 %s43, 1
    %s45 = scalar_select %p42, %s43, %s44
    %p48 = pneg %p42
    %p49 = scmp.eq.s32.totalorder %s7, 3
    %p50 = por %p48, %p49
    %p51 = scmp.ne.s32.totalorder %s43, %s46
    %p52 = scmp.eq.s32.totalorder %s7, 0
    %p53 = por %p51, %p52
    %p54 = scmp.ne.s32.totalorder %s43, %s46
    %p55 = scmp.eq.s32.totalorder %s12, 3
    %p56 = por %p54, %p55
    %p57 = scmp.ne.s32.totalorder %s46, %s47
    %p58 = scmp.eq.s32.totalorder %s12, 0
    %p59 = por %p57, %p58
    %p60 = scmp.ne.s32.totalorder %s46, %s47
    %p61 = scmp.eq.s32.totalorder %s13, 3
    %p62 = por %p60, %p61
    %p64 = scmp.ne.s32.totalorder %s47, %s63
    %p65 = scmp.eq.s32.totalorder %s13, 0
    %p66 = por %p64, %p65
    %p67 = scmp.le.s32.totalorder 1, %s7
    %p68 = scmp.lt.s32.totalorder %s7, 5
    %p69 = pnand %p67, %p68
    %p70 = pneg %p69
    // Predicated region
    $region9: #{maxpool3d.1} parent=5 // pred_check
      _
    $region10: #{maxpool3d.1} parent=5 // pred_check_branch
      %72 = sbr.rel (%p69) target = $region12
    $region11: #{maxpool3d.1} parent=5 // pred_region
      %s73 = ssub.s32 %s7, 1
    $region12: #{maxpool3d.1} parent=5 // pred_fallthru
      _
    %p74 = scmp.lt.s32.totalorder %s7, 4
    // Predicated region
    $region13: #{maxpool3d.1} parent=5 // pred_check
      %p75 = pneg %p74
    $region14: #{maxpool3d.1} parent=5 // pred_check_branch
      %77 = sbr.rel (%p75) target = $region16
    $region15: #{maxpool3d.1} parent=5 // pred_region
      // Predicated region
      $region17: #{maxpool3d.1} parent=15 // pred_check
        %p78 = pneg %p27
      $region18: #{maxpool3d.1} parent=15 // pred_check_branch
        %80 = sbr.rel (%p78) target = $region20
      $region19: #{maxpool3d.1} parent=15 // pred_region
        %s81 = smul.u32 2, %s7
        %p82 = scmp.lt.s32.totalorder %s81, 7
        %s83 = scalar_select %p82, %s81, 7
        %s84 = smul.addr %s83, 2
        %s85 = smul.addr %s84, 8
        %s86 = scalar_lea.vmem %s0, %s85
        %s87 = smul.u32 2, %s7
      $region20: #{maxpool3d.1} parent=15 // pred_fallthru
        _
    $region16: #{maxpool3d.1} parent=5 // pred_fallthru
      _
    %p88 = scmp.le.s32.totalorder 1, %s7
    %p89 = scmp.lt.s32.totalorder %s7, 5
    %p90 = pnand %p88, %p89
    %p91 = pneg %p90
    // Predicated region
    $region21: #{maxpool3d.1} parent=5 // pred_check
      _
    $region22: #{maxpool3d.1} parent=5 // pred_check_branch
      %93 = sbr.rel (%p90) target = $region24
    $region23: #{maxpool3d.1} parent=5 // pred_region
      %s94 = ssub.s32 %s7, 1
      %s95 = smul.u32 2, %s12
      %p96 = scmp.lt.s32.totalorder %s95, 7
      %s97 = scalar_select %p96, %s95, 7
      %s98 = smul.addr %s97, 2
      %s99 = smul.addr %s98, 8
      %s100 = scalar_lea.vmem %s0, %s99
      %p101 = pneg %p33
      %p102 = pneg %p30
      %p103 = pneg %p59
      %p104 = pneg %p56
      %s105 = smul.u32 2, %s12
      %p106 = scmp.lt.s32.totalorder %s105, 7
      %s107 = scalar_select %p106, %s105, 7
      %s108 = smul.addr %s107, 2
      %s109 = smul.addr %s108, 8
      %s110 = scalar_lea.vmem %s1, %s109
      %s111 = smul.u32 2, %s12
      %p112 = scmp.lt.s32.totalorder %s111, 7
      %s113 = scalar_select %p112, %s111, 7
      %s114 = smul.addr %s113, 2
      %s115 = smul.addr %s114, 8
      %s116 = scalar_lea.vmem %s0, %s115
      %s117 = smul.u32 2, %s12
      %s118 = smul.u32 2, %s12
      %p119 = scmp.lt.s32.totalorder %s118, 7
      %s120 = scalar_select %p119, %s118, 7
      %s121 = smul.addr %s120, 2
      %s122 = smul.addr %s121, 8
      %s123 = scalar_lea.vmem %s1, %s122
      %s124 = smul.u32 2, %s12
      %v125 = vlaneseq
      %v126 = vand.u32 %v125, 127
      %v127 = vadd.s32 %v126, 128
      %v128 = vand.u32 %v126, 15
      %v129 = vand.u32 %v127, 15
      %vm130 = vcmp.eq.s32.totalorder %v128, 0
      %vm131 = vcmp.eq.s32.totalorder %v129, 0
      %vm132 = vcmp.eq.s32.totalorder %v128, 15
      %vm133 = vcmp.eq.s32.totalorder %v129, 15
      %vm134 = vcmp.lt.s32.totalorder %v126, 16
      %vm135 = vcmp.lt.s32.totalorder %v127, 16
      %vm136 = vcmp.ge.s32.totalorder %v126, 240
      %vm137 = vcmp.ge.s32.totalorder %v127, 240
      %v138 = vlaneseq
      %v139 = vshrl.u32 %v138, 7
      %vm140 = vcmp.eq.s32.totalorder %v139, 0
      %vm141 = vcmp.eq.s32.totalorder %v139, 7
      %v142 = vld [vmem:[%s116] sm:$0xff]
      %v143 = vld [vmem:[%s116 + $0x8] sm:$0xff]
      %v144 = vld [vmem:[%s116 + $0x10] sm:$0xff]
      %v145 = vld [vmem:[%s116 + $0x18] sm:$0xff]
      %146 = vrot.lane.b32.xlu0 %v142, 1
      %v147 = vpop.permute.xlu0 %146
      %148 = vrot.lane.b32.xlu0 %v144, 1
      %v149 = vpop.permute.xlu0 %148
      %150 = vrot.lane.b32.xlu0 %v143, 1
      %v151 = vpop.permute.xlu0 %150
      %152 = vrot.lane.b32.xlu0 %v145, 1
      %v153 = vpop.permute.xlu0 %152
      %vm154 = vcmp.lt.s32.totalorder %v126, 1
      %v155 = vsel %vm154, %v147, %v151
      %v156 = vsel %vm154, %v149, %v153
      %v157 = vsel %vm154, %v151, %v147
      %v158 = vsel %vm154, %v153, %v149
      %v159 = vsel %vm130, 1, 0
      %v160 = vsel %vm131, 1, 0
      %vm161 = vcmp.eq.s32.totalorder %v159, 1
      %vm162 = vcmp.eq.s32.totalorder %v160, 1
      %v163 = vsel %vm161, -inf, %v157
      %v164 = vsel %vm162, -inf, %v155
      %v165 = vsel %vm161, -inf, %v158
      %v166 = vsel %vm162, -inf, %v156
      %167 = vrot.lane.b32.xlu0 %v142, 127
      %v168 = vpop.permute.xlu0 %167
      %169 = vrot.lane.b32.xlu0 %v144, 127
      %v170 = vpop.permute.xlu0 %169
      %171 = vrot.lane.b32.xlu0 %v143, 127
      %v172 = vpop.permute.xlu0 %171
      %173 = vrot.lane.b32.xlu0 %v145, 127
      %v174 = vpop.permute.xlu0 %173
      %vm175 = vcmp.lt.s32.totalorder %v126, 127
      %v176 = vsel %vm175, %v168, %v172
      %v177 = vsel %vm175, %v170, %v174
      %v178 = vsel %vm175, %v172, %v168
      %v179 = vsel %vm175, %v174, %v170
      %v180 = vsel %vm132, 1, 0
      %v181 = vsel %vm133, 1, 0
      %vm182 = vcmp.eq.s32.totalorder %v180, 1
      %vm183 = vcmp.eq.s32.totalorder %v181, 1
      %v184 = vsel %vm182, -inf, %v176
      %v185 = vsel %vm183, -inf, %v178
      %v186 = vsel %vm182, -inf, %v177
      %v187 = vsel %vm183, -inf, %v179
      %v188 = vmax.f32 %v163, %v184
      %v189 = vmax.f32 %v164, %v185
      %v190 = vmax.f32 %v165, %v186
      %v191 = vmax.f32 %v166, %v187
      %v192 = vmax.f32 %v142, %v188
      %v193 = vmax.f32 %v143, %v189
      %v194 = vmax.f32 %v144, %v190
      %v195 = vmax.f32 %v145, %v191
      %196 = vrot.lane.b32.xlu0 %v192, 16
      %v197 = vpop.permute.xlu0 %196
      %198 = vrot.lane.b32.xlu0 %v194, 16
      %v199 = vpop.permute.xlu0 %198
      %200 = vrot.lane.b32.xlu0 %v193, 16
      %v201 = vpop.permute.xlu0 %200
      %202 = vrot.lane.b32.xlu0 %v195, 16
      %v203 = vpop.permute.xlu0 %202
      %v204 = vsel %vm134, %v197, %v201
      %v205 = vsel %vm134, %v199, %v203
      %v206 = vsel %vm134, %v201, %v197
      %v207 = vsel %vm134, %v203, %v199
      %v208 = vsel %vm134, 1, 0
      %v209 = vsel %vm135, 1, 0
      %vm210 = vcmp.eq.s32.totalorder %v208, 1
      %vm211 = vcmp.eq.s32.totalorder %v209, 1
      %v212 = vsel %vm210, -inf, %v206
      %v213 = vsel %vm211, -inf, %v204
      %v214 = vsel %vm210, -inf, %v207
      %v215 = vsel %vm211, -inf, %v205
      %216 = vrot.lane.b32.xlu0 %v192, 112
      %v217 = vpop.permute.xlu0 %216
      %218 = vrot.lane.b32.xlu0 %v194, 112
      %v219 = vpop.permute.xlu0 %218
      %220 = vrot.lane.b32.xlu0 %v193, 112
      %v221 = vpop.permute.xlu0 %220
      %222 = vrot.lane.b32.xlu0 %v195, 112
      %v223 = vpop.permute.xlu0 %222
      %vm224 = vcmp.lt.s32.totalorder %v126, 112
      %v225 = vsel %vm224, %v217, %v221
      %v226 = vsel %vm224, %v219, %v223
      %v227 = vsel %vm224, %v221, %v217
      %v228 = vsel %vm224, %v223, %v219
      %v229 = vsel %vm136, 1, 0
      %v230 = vsel %vm137, 1, 0
      %vm231 = vcmp.eq.s32.totalorder %v229, 1
      %vm232 = vcmp.eq.s32.totalorder %v230, 1
      %v233 = vsel %vm231, -inf, %v225
      %v234 = vsel %vm232, -inf, %v227
      %v235 = vsel %vm231, -inf, %v226
      %v236 = vsel %vm232, -inf, %v228
      %v237 = vmax.f32 %v212, %v233
      %v238 = vmax.f32 %v213, %v234
      %v239 = vmax.f32 %v214, %v235
      %v240 = vmax.f32 %v215, %v236
      %v241 = vmax.f32 %v192, %v237
      %v242 = vmax.f32 %v193, %v238
      %v243 = vmax.f32 %v194, %v239
      %v244 = vmax.f32 %v195, %v240
      %v245 = vrot.slane %v241, 7
      %v246 = vrot.slane %v242, 7
      %v247 = vrot.slane %v243, 7
      %v248 = vrot.slane %v244, 7
      %v249 = vsel %vm140, 1, 0
      %vm250 = vcmp.eq.s32.totalorder %v249, 1
      %v251 = vsel %vm250, -inf, %v245
      %v252 = vsel %vm250, -inf, %v246
      %v253 = vsel %vm250, -inf, %v247
      %v254 = vsel %vm250, -inf, %v248
      %v255 = vrot.slane %v241, 1
      %v256 = vrot.slane %v242, 1
      %v257 = vrot.slane %v243, 1
      %v258 = vrot.slane %v244, 1
      %v259 = vsel %vm141, 1, 0
      %vm260 = vcmp.eq.s32.totalorder %v259, 1
      %v261 = vsel %vm260, -inf, %v255
      %v262 = vsel %vm260, -inf, %v256
      %v263 = vsel %vm260, -inf, %v257
      %v264 = vsel %vm260, -inf, %v258
      %v265 = vmax.f32 %v251, %v261
      %v266 = vmax.f32 %v252, %v262
      %v267 = vmax.f32 %v253, %v263
      %v268 = vmax.f32 %v254, %v264
      %v269 = vmax.f32 %v241, %v265
      %v270 = vmax.f32 %v242, %v266
      %v271 = vmax.f32 %v243, %v267
      %v272 = vmax.f32 %v244, %v268
      %273 = vst [vmem:[%s123] sm:$0xff] %v269
      %274 = vst [vmem:[%s123 + $0x8] sm:$0xff] %v270
      %275 = vst [vmem:[%s123 + $0x10] sm:$0xff] %v271
      %276 = vst [vmem:[%s123 + $0x18] sm:$0xff] %v272
      %s277 = smul.u32 2, %s12
      %p278 = scmp.lt.s32.totalorder %s277, 7
      %s279 = scalar_select %p278, %s277, 7
      %s280 = smul.addr %s279, 2
      %s281 = smul.addr %s280, 8
      %s282 = scalar_lea.vmem %s1, %s281
      // Predicated region
      $region25: #{maxpool3d.1} parent=23 // pred_check
        %p283 = pneg %p56
      $region26: #{maxpool3d.1} parent=23 // pred_check_branch
        %285 = sbr.rel (%p283) target = $region28
      $region27: #{maxpool3d.1} parent=23 // pred_region
        %s286 = smul.u32 2, %s12
      $region28: #{maxpool3d.1} parent=23 // pred_fallthru
        _
    $region24: #{maxpool3d.1} parent=5 // pred_fallthru
      _
    %p287 = scmp.le.s32.totalorder 2, %s7
    // Predicated region
    $region29: #{maxpool3d.1} parent=5 // pred_check
      %p288 = pneg %p287
    $region30: #{maxpool3d.1} parent=5 // pred_check_branch
      %290 = sbr.rel (%p288) target = $region32
    $region31: #{maxpool3d.1} parent=5 // pred_region
      %s291 = ssub.s32 %s7, 2
      // Predicated region
      $region33: #{maxpool3d.1} parent=31 // pred_check
        %p292 = pneg %p62
      $region34: #{maxpool3d.1} parent=31 // pred_check_branch
        %294 = sbr.rel (%p292) target = $region36
      $region35: #{maxpool3d.1} parent=31 // pred_region
        %s295 = smul.u32 2, %s13
        %p296 = scmp.lt.s32.totalorder %s295, 7
        %s297 = scalar_select %p296, %s295, 7
        %s298 = smul.addr %s297, 2
        %s299 = smul.addr %s298, 8
        %s300 = scalar_lea.vmem %s1, %s299
      $region36: #{maxpool3d.1} parent=31 // pred_fallthru
        _
    $region32: #{maxpool3d.1} parent=5 // pred_fallthru
      _
  $region6: #{maxpool3d.1} parent=0 // loop_footer
    %s11 = sadd.s32 1, %s7
  $region7: #{maxpool3d.1} parent=0 // loop_footer_branch
    %6 = sbr.rel target = $region3
  $region8: #{maxpool3d.1} parent=0 // loop_exit
    _

</llo_original>
